<compile_context>
chip_gen: v5e
topology: v5e:2x2
jax: 0.10.0
libtpu: 0.0.40
codegen_flags: <defaults>
</compile_context>

<pallas_src>
import jax
import jax.numpy as jnp
from jax import lax
from jax.experimental import pallas as pl
from jax.experimental.pallas import tpu as pltpu


def _vmem_capacity_bytes():
    """Per-core VMEM capacity, with a conservative fallback (v7x = 64 MiB)."""
    try:
        return int(pltpu.get_tpu_info().vmem_capacity_bytes)
    except Exception:
        return 64 << 20


def spectral_mul_pallas(xs, ws, *, block_m=None, block_b=None):
    """Mode-batched real-embedded complex matmul out[m] = xs[m] @ ws[m] on the MXU.

    xs : (M, B, 2*Cin)      [xr | xi] stacked on the lane axis
    ws : (M, 2*Cin, 2*Cout) [[wr, wi], [-wi, wr]]
    returns out : (M, B, 2*Cout) float32, [..., :Cout] = Re, [..., Cout:] = Im
    """
    M, B, C2in = xs.shape
    C2out = ws.shape[2]
    x_isz = jnp.dtype(xs.dtype).itemsize
    w_isz = jnp.dtype(ws.dtype).itemsize

    vmem_cap = _vmem_capacity_bytes()
    vmem_budget = int(vmem_cap * 0.70)          # tiles + in-kernel temps

    # ---- batch block (MXU M-dim, sublane axis of x/out blocks) -------------
    if block_b is None:
        if B % 8 == 0:
            block_b = min(B, 256)               # fill MXU rows on v6e/v7x
            while B % block_b:
                block_b -= 8
        else:
            block_b = B                         # full-extent sublane dim is legal

    # ---- mode block (un-tiled leading axis); must divide M (no jnp.pad) ----
    if block_m is None:
        per_mode = (2 * block_b * C2in * x_isz          # x, double-buffered
                    + 2 * C2in * C2out * w_isz          # w, double-buffered
                    + 2 * block_b * C2out * 4           # out, double-buffered
                    + block_b * C2out * 4)              # einsum result temp
        cap = max(1, vmem_budget // max(per_mode, 1))
        cap = min(cap, M, 1024)
        block_m = 1
        for d in range(cap, 0, -1):
            if M % d == 0:
                block_m = d
                break

    # ---- make sure both TensorCores get work (v7x megacore) ----------------
    if (M // block_m) * (B // block_b) < 2:
        if block_m % 2 == 0:
            block_m //= 2
        elif block_b % 16 == 0:
            block_b //= 2
        elif block_m > 1:
            for d in range(block_m - 1, 0, -1):
                if M % d == 0:
                    block_m = d
                    break

    grid = (M // block_m, B // block_b)         # modes outer, batch inner
    # (weight tile's index map is constant in the inner batch axis -> it stays
    #  resident in VMEM across batch blocks, no re-DMA.)

    def kernel(x_ref, w_ref, o_ref):
        # One real matmul per mode encodes the full complex product:
        #   [a | b] @ [[c, d], [-d, c]] = [a@c - b@d | a@d + b@c]
        o_ref[...] = jnp.einsum('mbi,mio->mbo', x_ref[...], w_ref[...],
                                preferred_element_type=jnp.float32)

    x_spec = pl.BlockSpec((block_m, block_b, C2in), lambda mi, bi: (mi, bi, 0))
    w_spec = pl.BlockSpec((block_m, C2in, C2out), lambda mi, bi: (mi, 0, 0))
    o_spec = pl.BlockSpec((block_m, block_b, C2out), lambda mi, bi: (mi, bi, 0))
    # Note: for small model widths, padding 2*Cout (lanes) to a multiple of 128
    # in the wrapper avoids masked partial stores; typical FNO widths (64)
    # are already lane-dense via the 2*Cout stacking.

    # VMEM accounting: double-buffered tiles + the einsum result temporary.
    tile_vmem = (2 * block_m * block_b * C2in * x_isz
                 + 2 * block_m * C2in * C2out * w_isz
                 + 2 * block_m * block_b * C2out * 4
                 + block_m * block_b * C2out * 4)
    vmem_limit = int(min(max(tile_vmem + (4 << 20), 16 << 20),
                         int(vmem_cap * 0.75)))

    out = pl.pallas_call(
        kernel,
        grid_spec=pltpu.PrefetchScalarGridSpec(
            num_scalar_prefetch=0,
            grid=grid,
            in_specs=[x_spec, w_spec],
            out_specs=o_spec,
        ),
        out_shape=jax.ShapeDtypeStruct((M, B, C2out), jnp.float32),
        compiler_params=pltpu.CompilerParams(
            dimension_semantics=("parallel", "parallel"),
            vmem_limit_bytes=vmem_limit,
        ),
    )(xs, ws)
    return out


def spectral_conv1d(x, w_real, w_imag, modes, compute_dtype=jnp.float32):
    """Forward pass of SpectralConv1d.

    x      : (B, Cin, N)  float32
    w_real : (Cin, Cout, modes) float32   (real part of complex weights)
    w_imag : (Cin, Cout, modes) float32   (imag part of complex weights)
    compute_dtype : matmul operand dtype (jnp.bfloat16 is the production knob;
                    accumulation stays float32 either way).
    returns: (B, Cout, N) float32
    """
    B, Cin, N = x.shape
    Cout = w_real.shape[1]
    K = N // 2 + 1

    # rfft along the spatial axis (glue, outside the kernel).
    x_ft = jnp.fft.rfft(x, axis=-1)[:, :, :modes]                  # (B, Cin, M) c64

    # Stack re/im on the channel axis, then a single transpose to kernel layout.
    x_stacked = jnp.concatenate(
        [jnp.real(x_ft), jnp.imag(x_ft)], axis=1)                  # (B, 2*Cin, M) f32
    xs = jnp.transpose(x_stacked, (2, 0, 1)).astype(compute_dtype)  # (M, B, 2*Cin)

    # Real-embedded complex weights: (M, 2*Cin, 2*Cout) = [[wr, wi], [-wi, wr]].
    wr_t = jnp.transpose(w_real, (2, 0, 1))                        # (M, Cin, Cout)
    wi_t = jnp.transpose(w_imag, (2, 0, 1))
    ws = jnp.concatenate(
        [jnp.concatenate([wr_t, wi_t], axis=2),
         jnp.concatenate([-wi_t, wr_t], axis=2)],
        axis=1).astype(compute_dtype)                              # (M, 2*Cin, 2*Cout)

    out_s = spectral_mul_pallas(xs, ws)                            # (M, B, 2*Cout) f32

    # Single transpose back, split re/im, zero-pad to K via lax.pad (fusable).
    out_t = jnp.transpose(out_s, (1, 2, 0))                        # (B, 2*Cout, M)
    out_ft = lax.complex(out_t[:, :Cout, :], out_t[:, Cout:, :])   # (B, Cout, M) c64
    out_full = lax.pad(out_ft, jnp.array(0, dtype=out_ft.dtype),
                       ((0, 0, 0), (0, 0, 0), (0, K - modes, 0)))
    return jnp.fft.irfft(out_full, n=N, axis=-1).astype(jnp.float32)


if __name__ == "__main__":
    # Small shapes consistent with the module: [batch, in_channels, x]
    B, Cin, Cout, N, modes = 2, 4, 4, 16, 8   # modes <= N//2 + 1 = 9

    key = jax.random.PRNGKey(0)
    kx, kwr, kwi = jax.random.split(key, 3)

    x = jax.random.normal(kx, (B, Cin, N), dtype=jnp.float32)

    # Deterministic weight init mirroring the module:
    #   scale * rand(in, out, modes, dtype=cfloat)  (uniform [0,1) re & im)
    scale = 1.0 / (Cin * Cout)
    w_real = (scale * jax.random.uniform(kwr, (Cin, Cout, modes))).astype(jnp.float32)
    w_imag = (scale * jax.random.uniform(kwi, (Cin, Cout, modes))).astype(jnp.float32)

    out = spectral_conv1d(x, w_real, w_imag, modes)
    out = jax.block_until_ready(out)

    # Pure-JAX reference for sanity (same math path, no Pallas).
    x_ft = jnp.fft.rfft(x, axis=-1)[:, :, :modes]
    w_c = (w_real + 1j * w_imag).astype(jnp.complex64)
    ref_ft = jnp.einsum('bix,iox->box', x_ft, w_c)
    ref_full = jnp.zeros((B, Cout, N // 2 + 1), jnp.complex64).at[:, :, :modes].set(ref_ft)
    ref = jnp.fft.irfft(ref_full, n=N, axis=-1)
    assert out.shape == (B, Cout, N)
    assert jnp.allclose(out, ref, atol=1e-5, rtol=1e-5)

    print("KERNEL_OK")
</pallas_src>

<mosaic_0001>
module attributes {stable_mosaic.version = 11 : i64} {
  func.func @kernel(%arg0: i32, %arg1: i32, %arg2: memref<4x2x8xf32, #tpu.memory_space<vmem>>, %arg3: memref<4x8x8xf32, #tpu.memory_space<vmem>>, %arg4: memref<4x2x8xf32, #tpu.memory_space<vmem>>) attributes {dimension_semantics = [#tpu.dimension_semantics<parallel>, #tpu.dimension_semantics<parallel>], iteration_bounds = array<i64: 2, 1>, scalar_prefetch = 0 : i64, scratch_operands = 0 : i64, tpu.core_type = #tpu.core_type<tc>, window_params = [{transform_indices = @transform_0, window_bounds = array<i64: 4, 2, 8>}, {transform_indices = @transform_1, window_bounds = array<i64: 4, 8, 8>}, {transform_indices = @transform_2, window_bounds = array<i64: 4, 2, 8>}]} {
    %c0 = arith.constant 0 : index
    %c0_0 = arith.constant 0 : index
    %c0_1 = arith.constant 0 : index
    %0 = vector.load %arg2[%c0, %c0_0, %c0_1] : memref<4x2x8xf32, #tpu.memory_space<vmem>>, vector<4x2x8xf32>
    %c0_2 = arith.constant 0 : index
    %c0_3 = arith.constant 0 : index
    %c0_4 = arith.constant 0 : index
    %1 = vector.load %arg3[%c0_2, %c0_3, %c0_4] : memref<4x8x8xf32, #tpu.memory_space<vmem>>, vector<4x8x8xf32>
    "tpu.trace_start"() <{level = 10 : i32, message = "mbi,mio->mbo"}> : () -> ()
    %cst = arith.constant dense<0.000000e+00> : vector<4x2x8xf32>
    %2 = tpu.matmul %0, %1, %cst {dimension_numbers = #tpu.dot_dimension_numbers<[2], [1], [1], [2], [0, 0, 0, 1, 1, 2], [0], [0]>} : vector<4x2x8xf32>, vector<4x8x8xf32>, vector<4x2x8xf32> -> vector<4x2x8xf32>
    "tpu.trace_stop"() : () -> ()
    %c0_5 = arith.constant 0 : index
    %c0_6 = arith.constant 0 : index
    %c0_7 = arith.constant 0 : index
    %3 = vector.load %arg4[%c0_5, %c0_6, %c0_7] : memref<4x2x8xf32, #tpu.memory_space<vmem>>, vector<4x2x8xf32>
    tpu.vector_store %arg4[%c0_5, %c0_6, %c0_7], %2 {strides = array<i32>} : memref<4x2x8xf32, #tpu.memory_space<vmem>>, vector<4x2x8xf32>,
    return
  }
  func.func @transform_0(%arg0: i32, %arg1: i32) -> (i32, i32, i32) {
    %c0_i32 = arith.constant 0 : i32
    %c0_i32_0 = arith.constant 0 : i32
    return %arg0, %arg1, %c0_i32 : i32, i32, i32
  }
  func.func @transform_1(%arg0: i32, %arg1: i32) -> (i32, i32, i32) {
    %c0_i32 = arith.constant 0 : i32
    %c0_i32_0 = arith.constant 0 : i32
    %c0_i32_1 = arith.constant 0 : i32
    return %arg0, %c0_i32, %c0_i32_0 : i32, i32, i32
  }
  func.func @transform_2(%arg0: i32, %arg1: i32) -> (i32, i32, i32) {
    %c0_i32 = arith.constant 0 : i32
    %c0_i32_0 = arith.constant 0 : i32
    return %arg0, %arg1, %c0_i32 : i32, i32, i32
  }
}

</mosaic_0001>

<llo_original>
// kernel: tpu_custom_call.1
$region0: #{tpu_custom_call.1}
  #allocation0 [shape = 'u32[]', space=smem, size = 0x4, offset = 0x4, fixed_abs, tag = 'smem constant byte address 0x4 - core index']
  #allocation1 [shape = 'u32[72,128]{1,0:T(1,128)}', space=vmem, size = 0x9000, scoped, tag = 'internal scratch']
  %s0 = inlined_call_operand.hbm [shape: f32[8,2,8], index: 0, kind: input, shape index: {}]
  %s1 = inlined_call_operand.hbm [shape: f32[8,8,8], index: 1, kind: input, shape index: {}]
  %s2 = inlined_call_operand.hbm [shape: f32[8,2,8], index: 2, kind: output, shape index: {}]
  %s3 = sld [smem:[#allocation0]]
  $region49: #{tpu_custom_call.1} parent=0
    _
  %s5 = ssub.s32 1, %s3
  %s6 = scalar_select 0, %s5, %s3
  $region1: #{tpu_custom_call.1} parent=0
    #allocation2 [shape = 'u8[8192]{0}', space=vmem, size = 0x2000, scoped, tag = 'input window, operand 0']
    #allocation3 [shape = 's32[2]{0}', space=sflag, size = 0x8, scoped, tag = 'scoped memory for tpu_custom_call.1']
    #allocation4 [shape = 's32[2]{0}', space=sflag, size = 0x8, scoped, tag = 'scoped memory for tpu_custom_call.1']
    #allocation5 [shape = 'u8[32768]{0}', space=vmem, size = 0x8000, scoped, tag = 'input window, operand 1']
    #allocation6 [shape = 's32[2]{0}', space=sflag, size = 0x8, scoped, tag = 'scoped memory for tpu_custom_call.1']
    #allocation7 [shape = 'u8[8192]{0}', space=vmem, size = 0x2000, scoped, tag = 'output window, operand 0']
    %7 = vsyncpa [#allocation3], 0
    %s8 = scalar_lea.sflag [#allocation3], 1
    %9 = vsyncpa %s8, 0
    %10 = vsyncpa [#allocation6], 0
    %s11 = scalar_lea.sflag [#allocation6], 1
    %12 = vsyncpa %s11, 0
    %13 = vsyncpa [#allocation4], 0
    %s14 = scalar_lea.sflag [#allocation4], 1
    %15 = vsyncpa %s14, 0
    loop: start=0, step=1, limit=4
    $region2: #{tpu_custom_call.1} parent=1 // loop_pre_header
      _
    $region3: #{tpu_custom_call.1} parent=1 // loop_header
      %s17 = sphi 0, %s21
      %p18 = scmp.ge.s32.totalorder %s17, 4
      %s24 = sphi 0, %s36
      %s25 = sphi 0, %s32
      %s26 = sphi 0, %s24
      %s27 = sphi 0, %s25
      %s28 = sphi 0, %s26
      %s29 = sphi 0, %s27
      %s41 = sphi 0, %s43
      %s44 = sphi 0, %s41
      %s45 = sphi 0, %s44
      %s61 = sphi 0, %s45
      %s67 = sphi 0, %s69
      %s70 = sphi 0, %s67
      %s71 = sphi 0, %s70
      %s87 = sphi 0, %s71
      %s95 = sphi 0, %s97
      %s98 = sphi 0, %s95
      %s99 = sphi 0, %s98
      %s115 = sphi 0, %s99
    $region4: #{tpu_custom_call.1} parent=1 // loop_header_branch
      %20 = sbr.rel (%p18) target = $region8
    $region5: #{tpu_custom_call.1} parent=1 // loop_body
      %s22 = ssub.s32 %s17, 1
      %s23 = ssub.s32 %s17, 2
      %s30 = sadd.s32 1, %s25
      %p31 = scmp.ge.s32.totalorder %s30, 1
      %s32 = scalar_select %p31, 0, %s30
      %s33 = sadd.s32 1, %s24
      %s34 = scalar_select %p31, %s33, %s24
      %p35 = scmp.ge.s32.totalorder %s34, 2
      %s36 = scalar_select %p35, 0, %s34
      %s37 = ssub.s32 %s24, %s36
      %s38 = ssub.s32 %s25, %s32
      %s39 = sor.u32 %s37, %s38
      %p40 = scmp.eq.s32.totalorder %s39, 0
      %s42 = sadd.s32 %s41, 1
      %s43 = scalar_select %p40, %s41, %s42
      %p46 = pneg %p40
      %p47 = scmp.eq.s32.totalorder %s17, 1
      %p48 = por %p46, %p47
      %p49 = scmp.ne.s32.totalorder %s41, %s44
      %p50 = scmp.eq.s32.totalorder %s17, 0
      %p51 = por %p49, %p50
      %p52 = scmp.ne.s32.totalorder %s41, %s44
      %p53 = scmp.eq.s32.totalorder %s22, 1
      %p54 = por %p52, %p53
      %p55 = scmp.ne.s32.totalorder %s44, %s45
      %p56 = scmp.eq.s32.totalorder %s22, 0
      %p57 = por %p55, %p56
      %p58 = scmp.ne.s32.totalorder %s44, %s45
      %p59 = scmp.eq.s32.totalorder %s23, 1
      %p60 = por %p58, %p59
      %p62 = scmp.ne.s32.totalorder %s45, %s61
      %p63 = scmp.eq.s32.totalorder %s23, 0
      %p64 = por %p62, %p63
      %s65 = ssub.s32 %s24, %s36
      %p66 = scmp.eq.s32.totalorder %s65, 0
      %s68 = sadd.s32 %s67, 1
      %s69 = scalar_select %p66, %s67, %s68
      %p72 = pneg %p66
      %p73 = scmp.eq.s32.totalorder %s17, 1
      %p74 = por %p72, %p73
      %p75 = scmp.ne.s32.totalorder %s67, %s70
      %p76 = scmp.eq.s32.totalorder %s17, 0
      %p77 = por %p75, %p76
      %p78 = scmp.ne.s32.totalorder %s67, %s70
      %p79 = scmp.eq.s32.totalorder %s22, 1
      %p80 = por %p78, %p79
      %p81 = scmp.ne.s32.totalorder %s70, %s71
      %p82 = scmp.eq.s32.totalorder %s22, 0
      %p83 = por %p81, %p82
      %p84 = scmp.ne.s32.totalorder %s70, %s71
      %p85 = scmp.eq.s32.totalorder %s23, 1
      %p86 = por %p84, %p85
      %p88 = scmp.ne.s32.totalorder %s71, %s87
      %p89 = scmp.eq.s32.totalorder %s23, 0
      %p90 = por %p88, %p89
      %s91 = ssub.s32 %s24, %s36
      %s92 = ssub.s32 %s25, %s32
      %s93 = sor.u32 %s91, %s92
      %p94 = scmp.eq.s32.totalorder %s93, 0
      %s96 = sadd.s32 %s95, 1
      %s97 = scalar_select %p94, %s95, %s96
      %p100 = pneg %p94
      %p101 = scmp.eq.s32.totalorder %s17, 1
      %p102 = por %p100, %p101
      %p103 = scmp.ne.s32.totalorder %s95, %s98
      %p104 = scmp.eq.s32.totalorder %s17, 0
      %p105 = por %p103, %p104
      %p106 = scmp.ne.s32.totalorder %s95, %s98
      %p107 = scmp.eq.s32.totalorder %s22, 1
      %p108 = por %p106, %p107
      %p109 = scmp.ne.s32.totalorder %s98, %s99
      %p110 = scmp.eq.s32.totalorder %s22, 0
      %p111 = por %p109, %p110
      %p112 = scmp.ne.s32.totalorder %s98, %s99
      %p113 = scmp.eq.s32.totalorder %s23, 1
      %p114 = por %p112, %p113
      %p116 = scmp.ne.s32.totalorder %s99, %s115
      %p117 = scmp.eq.s32.totalorder %s23, 0
      %p118 = por %p116, %p117
      %p119 = scmp.le.s32.totalorder 1, %s17
      %p120 = scmp.lt.s32.totalorder %s17, 3
      %p121 = pnand %p119, %p120
      %p122 = pneg %p121
      // Predicated region
      $region9: #{tpu_custom_call.1} parent=5 // pred_check
        _
      $region10: #{tpu_custom_call.1} parent=5 // pred_check_branch
        %124 = sbr.rel (%p121) target = $region12
      $region11: #{tpu_custom_call.1} parent=5 // pred_region
        %s125 = ssub.s32 %s17, 1
      $region12: #{tpu_custom_call.1} parent=5 // pred_fallthru
        _
      %p126 = scmp.lt.s32.totalorder %s17, 2
      // Predicated region
      $region13: #{tpu_custom_call.1} parent=5 // pred_check
        %p127 = pneg %p126
      $region14: #{tpu_custom_call.1} parent=5 // pred_check_branch
        %129 = sbr.rel (%p127) target = $region16
      $region15: #{tpu_custom_call.1} parent=5 // pred_region
        // Predicated region
        $region17: #{tpu_custom_call.1} parent=15 // pred_check
          %p130 = pneg %p51
        $region18: #{tpu_custom_call.1} parent=15 // pred_check_branch
          %132 = sbr.rel (%p130) target = $region20
        $region19: #{tpu_custom_call.1} parent=15 // pred_region
          %s133 = sand.u32 %s41, 1
          %s134 = scalar_lea.sflag [#allocation3], %s133
          %s135 = sand.u32 %s41, 1
          %s136 = smul.addr %s135, 8
          %s137 = scalar_lea.vmem [#allocation2], %s136
          %s138 = smul.u32 4, %s24
          %140 = vsyncadd %s134, 0
          %s141 = sadd.s32 %s25, %s138
          %s142 = smul.addr %s141, 2
          %s143 = scalar_lea.hbm %s0, %s142
          %s144 = sshll.u32 %s143, 4
          %s145 = int_to_ptr.hbm [resolvable:$true] %s144
          %s146 = sshll.u32 %s137, 4
          %s147 = int_to_ptr.vmem [resolvable:$true] %s146
          %152 = dma.hbm_to_vmem [thread:$0]  %s145, 128, %s147, %s134, 32, 32, 2
        $region20: #{tpu_custom_call.1} parent=15 // pred_fallthru
          _
        // Predicated region
        $region21: #{tpu_custom_call.1} parent=15 // pred_check
          %p153 = pneg %p77
        $region22: #{tpu_custom_call.1} parent=15 // pred_check_branch
          %155 = sbr.rel (%p153) target = $region24
        $region23: #{tpu_custom_call.1} parent=15 // pred_region
          %s156 = sand.u32 %s67, 1
          %s157 = scalar_lea.sflag [#allocation6], %s156
          %s158 = sand.u32 %s67, 1
          %s159 = smul.addr %s158, 32
          %s160 = scalar_lea.vmem [#allocation5], %s159
          %s161 = smul.u32 4, %s24
          %163 = vsyncadd %s157, 0
          %s164 = smul.addr %s161, 8
          %s165 = scalar_lea.hbm %s1, %s164
          %s166 = sshll.u32 %s165, 4
          %s167 = int_to_ptr.hbm [resolvable:$true] %s166
          %s168 = sshll.u32 %s160, 4
          %s169 = int_to_ptr.vmem [resolvable:$true] %s168
          %174 = dma.hbm_to_vmem [thread:$0]  %s167, 512, %s169, %s157, 128, 128, 8
        $region24: #{tpu_custom_call.1} parent=15 // pred_fallthru
          _
      $region16: #{tpu_custom_call.1} parent=5 // pred_fallthru
        _
      %p175 = scmp.le.s32.totalorder 1, %s17
      %p176 = scmp.lt.s32.totalorder %s17, 3
      %p177 = pnand %p175, %p176
      %p178 = pneg %p177
      // Predicated region
      $region25: #{tpu_custom_call.1} parent=5 // pred_check
        _
      $region26: #{tpu_custom_call.1} parent=5 // pred_check_branch
        %180 = sbr.rel (%p177) target = $region28
      $region27: #{tpu_custom_call.1} parent=5 // pred_region
        %s181 = ssub.s32 %s17, 1
        %s182 = sand.u32 %s44, 1
        %s183 = scalar_lea.sflag [#allocation3], %s182
        %s184 = sand.u32 %s44, 1
        %s185 = smul.addr %s184, 8
        %s186 = scalar_lea.vmem [#allocation2], %s185
        // Predicated region
        $region29: #{tpu_custom_call.1} parent=27 // pred_check
          %p187 = pneg %p57
        $region30: #{tpu_custom_call.1} parent=27 // pred_check_branch
          %189 = sbr.rel (%p187) target = $region32
        $region31: #{tpu_custom_call.1} parent=27 // pred_region
          %191 = dma.done %s183, 128
        $region32: #{tpu_custom_call.1} parent=27 // pred_fallthru
          _
        %s192 = sand.u32 %s70, 1
        %s193 = scalar_lea.sflag [#allocation6], %s192
        %s194 = sand.u32 %s70, 1
        %s195 = smul.addr %s194, 32
        %s196 = scalar_lea.vmem [#allocation5], %s195
        // Predicated region
        $region33: #{tpu_custom_call.1} parent=27 // pred_check
          %p197 = pneg %p83
        $region34: #{tpu_custom_call.1} parent=27 // pred_check_branch
          %199 = sbr.rel (%p197) target = $region36
        $region35: #{tpu_custom_call.1} parent=27 // pred_region
          %201 = dma.done %s193, 512
        $region36: #{tpu_custom_call.1} parent=27 // pred_fallthru
          _
        %s202 = sand.u32 %s44, 1
        %s203 = scalar_lea.sflag [#allocation3], %s202
        %s204 = sand.u32 %s44, 1
        %s205 = smul.addr %s204, 8
        %s206 = scalar_lea.vmem [#allocation2], %s205
        %p207 = pneg %p57
        %p208 = pneg %p54
        %s209 = sand.u32 %s70, 1
        %s210 = scalar_lea.sflag [#allocation6], %s209
        %s211 = sand.u32 %s70, 1
        %s212 = smul.addr %s211, 32
        %s213 = scalar_lea.vmem [#allocation5], %s212
        %p214 = pneg %p83
        %p215 = pneg %p80
        %p216 = pneg %p111
        %p217 = pneg %p108
        %s218 = sand.u32 %s98, 1
        %s219 = scalar_lea.sflag [#allocation4], %s218
        %s220 = sand.u32 %s98, 1
        %s221 = smul.addr %s220, 8
        %s222 = scalar_lea.vmem [#allocation7], %s221
        %s223 = smul.u32 4, %s26
        %s224 = smul.u32 4, %s26
        %s225 = smul.u32 4, %s26
        %v226 = vld [vmem:[%s186] sm:$0x3]
        %v227 = vld [vmem:[%s186 + $0x2] sm:$0x3]
        %v228 = vld [vmem:[%s186 + $0x4] sm:$0x3]
        %v229 = vld [vmem:[%s186 + $0x6] sm:$0x3]
        %v230 = vld [vmem:[%s196] sm:$0xff]
        %v231 = vld [vmem:[%s196 + $0x8] sm:$0xff]
        %v232 = vld [vmem:[%s196 + $0x10] sm:$0xff]
        %v233 = vld [vmem:[%s196 + $0x18] sm:$0xff]
        %vm234 = vcmask 64512
        %v236 = vsel %vm234, %v226, 0
        %238 = vmatpush.msra.mxu0 0.0
        %239 = vmatpush.msra.mxu0 0.0
        %240 = vmatpush.msra.mxu0 0.0
        %241 = vmatpush.msra.mxu0 0.0
        %242 = vmatpush.msra.mxu0 0.0
        %243 = vmatpush.msra.mxu0 0.0
        %244 = vmatpush.msra.mxu0 0.0
        %245 = vmatpush.msra.mxu0 0.0
        %246 = vmatpush.msra.mxu0 0.0
        %247 = vmatpush.msra.mxu0 0.0
        %248 = vmatpush.msra.mxu0 0.0
        %249 = vmatpush.msra.mxu0 0.0
        %250 = vmatpush.msra.mxu0 0.0
        %251 = vmatpush.msra.mxu0 0.0
        %252 = vmatpush.msra.mxu0 0.0
        %253 = vmatpush.msra.mxu0 %v230
        %254 = vmatmul.f32.gmra.mxu0 %v236
        %v255 = vpop.f32.mrf.mxu0
        %v256 = vadd.f32 0.0, %v255
        %257 = vdwg.mxu0
        %v259 = vsel %vm234, %v227, 0
        %261 = vmatpush.msra.mxu0 0.0
        %262 = vmatpush.msra.mxu0 0.0
        %263 = vmatpush.msra.mxu0 0.0
        %264 = vmatpush.msra.mxu0 0.0
        %265 = vmatpush.msra.mxu0 0.0
        %266 = vmatpush.msra.mxu0 0.0
        %267 = vmatpush.msra.mxu0 0.0
        %268 = vmatpush.msra.mxu0 0.0
        %269 = vmatpush.msra.mxu0 0.0
        %270 = vmatpush.msra.mxu0 0.0
        %271 = vmatpush.msra.mxu0 0.0
        %272 = vmatpush.msra.mxu0 0.0
        %273 = vmatpush.msra.mxu0 0.0
        %274 = vmatpush.msra.mxu0 0.0
        %275 = vmatpush.msra.mxu0 0.0
        %276 = vmatpush.msra.mxu0 %v231
        %277 = vmatmul.f32.gmra.mxu0 %v259
        %v278 = vpop.f32.mrf.mxu0
        %v279 = vadd.f32 0.0, %v278
        %280 = vdwg.mxu0
        %v282 = vsel %vm234, %v228, 0
        %284 = vmatpush.msra.mxu0 0.0
        %285 = vmatpush.msra.mxu0 0.0
        %286 = vmatpush.msra.mxu0 0.0
        %287 = vmatpush.msra.mxu0 0.0
        %288 = vmatpush.msra.mxu0 0.0
        %289 = vmatpush.msra.mxu0 0.0
        %290 = vmatpush.msra.mxu0 0.0
        %291 = vmatpush.msra.mxu0 0.0
        %292 = vmatpush.msra.mxu0 0.0
        %293 = vmatpush.msra.mxu0 0.0
        %294 = vmatpush.msra.mxu0 0.0
        %295 = vmatpush.msra.mxu0 0.0
        %296 = vmatpush.msra.mxu0 0.0
        %297 = vmatpush.msra.mxu0 0.0
        %298 = vmatpush.msra.mxu0 0.0
        %299 = vmatpush.msra.mxu0 %v232
        %300 = vmatmul.f32.gmra.mxu0 %v282
        %v301 = vpop.f32.mrf.mxu0
        %v302 = vadd.f32 0.0, %v301
        %303 = vdwg.mxu0
        %v305 = vsel %vm234, %v229, 0
        %307 = vmatpush.msra.mxu0 0.0
        %308 = vmatpush.msra.mxu0 0.0
        %309 = vmatpush.msra.mxu0 0.0
        %310 = vmatpush.msra.mxu0 0.0
        %311 = vmatpush.msra.mxu0 0.0
        %312 = vmatpush.msra.mxu0 0.0
        %313 = vmatpush.msra.mxu0 0.0
        %314 = vmatpush.msra.mxu0 0.0
        %315 = vmatpush.msra.mxu0 0.0
        %316 = vmatpush.msra.mxu0 0.0
        %317 = vmatpush.msra.mxu0 0.0
        %318 = vmatpush.msra.mxu0 0.0
        %319 = vmatpush.msra.mxu0 0.0
        %320 = vmatpush.msra.mxu0 0.0
        %321 = vmatpush.msra.mxu0 0.0
        %322 = vmatpush.msra.mxu0 %v233
        %323 = vmatmul.f32.gmra.mxu0 %v305
        %v324 = vpop.f32.mrf.mxu0
        %v325 = vadd.f32 0.0, %v324
        %326 = vdwg.mxu0
        %vm327 = vcmask 58368
        %328 = vst.msk [vmem:[%s222] sm:$0x3] %vm327, %v256
        %329 = vst.msk [vmem:[%s222 + $0x2] sm:$0x3] %vm327, %v279
        %330 = vst.msk [vmem:[%s222 + $0x4] sm:$0x3] %vm327, %v302
        %331 = vst.msk [vmem:[%s222 + $0x6] sm:$0x3] %vm327, %v325
        %s332 = sand.u32 %s98, 1
        %s333 = scalar_lea.sflag [#allocation4], %s332
        %s334 = sand.u32 %s98, 1
        %s335 = smul.addr %s334, 8
        %s336 = scalar_lea.vmem [#allocation7], %s335
        // Predicated region
        $region37: #{tpu_custom_call.1} parent=27 // pred_check
          %p337 = pneg %p108
        $region38: #{tpu_custom_call.1} parent=27 // pred_check_branch
          %339 = sbr.rel (%p337) target = $region40
        $region39: #{tpu_custom_call.1} parent=27 // pred_region
          %s340 = smul.u32 4, %s26
          %342 = vsyncadd %s333, 0
          %s343 = sadd.s32 %s27, %s340
          %s344 = smul.addr %s343, 2
          %s345 = scalar_lea.hbm %s2, %s344
          %s346 = sshll.u32 %s336, 4
          %s347 = int_to_ptr.vmem [resolvable:$true] %s346
          %s348 = sshll.u32 %s345, 4
          %s349 = int_to_ptr.hbm [resolvable:$true] %s348
          %354 = dma.vmem_to_hbm [thread:$0]  %s347, 128, %s349, %s333, 32, 32, 2
        $region40: #{tpu_custom_call.1} parent=27 // pred_fallthru
          _
      $region28: #{tpu_custom_call.1} parent=5 // pred_fallthru
        _
      %p355 = scmp.le.s32.totalorder 2, %s17
      // Predicated region
      $region41: #{tpu_custom_call.1} parent=5 // pred_check
        %p356 = pneg %p355
      $region42: #{tpu_custom_call.1} parent=5 // pred_check_branch
        %358 = sbr.rel (%p356) target = $region44
      $region43: #{tpu_custom_call.1} parent=5 // pred_region
        %s359 = ssub.s32 %s17, 2
        // Predicated region
        $region45: #{tpu_custom_call.1} parent=43 // pred_check
          %p360 = pneg %p114
        $region46: #{tpu_custom_call.1} parent=43 // pred_check_branch
          %362 = sbr.rel (%p360) target = $region48
        $region47: #{tpu_custom_call.1} parent=43 // pred_region
          %s363 = sand.u32 %s99, 1
          %s364 = scalar_lea.sflag [#allocation4], %s363
          %s365 = sand.u32 %s99, 1
          %s366 = smul.addr %s365, 8
          %s367 = scalar_lea.vmem [#allocation7], %s366
          %369 = dma.done %s364, 128
        $region48: #{tpu_custom_call.1} parent=43 // pred_fallthru
          _
      $region44: #{tpu_custom_call.1} parent=5 // pred_fallthru
        _
    $region6: #{tpu_custom_call.1} parent=1 // loop_footer
      %s21 = sadd.s32 1, %s17
    $region7: #{tpu_custom_call.1} parent=1 // loop_footer_branch
      %16 = sbr.rel target = $region3
    $region8: #{tpu_custom_call.1} parent=1 // loop_exit
      _
    %370 = vsyncpa [#allocation3], 1
    %s371 = scalar_lea.sflag [#allocation3], 1
    %372 = vsyncpa %s371, 1
    %373 = vsyncpa [#allocation6], 1
    %s374 = scalar_lea.sflag [#allocation6], 1
    %375 = vsyncpa %s374, 1
    %376 = vsyncpa [#allocation4], 1
    %s377 = scalar_lea.sflag [#allocation4], 1
    %378 = vsyncpa %s377, 1

</llo_original>
